<compile_context>
chip_gen: v5e
topology: v5e:2x2
jax: 0.10.0
libtpu: 0.0.40
codegen_flags: <defaults>
</compile_context>

<pallas_src>
import functools

import jax
import jax.numpy as jnp
from jax import lax
from jax.experimental import pallas as pl
from jax.experimental.pallas import tpu as pltpu


def _noisy_topk_router_kernel(x_ref, w_ref, b_ref, noise_ref,
                              router_ref, indices_ref, *, top_k, num_experts):
    # Fused projection on the MXU, produced directly in the lane-dense
    # (2E, TM) layout: out[e, t] = sum_d W[e, d] * x[t, d]  (same A @ B.T
    # contraction pattern as q @ k.T in flash attention).
    fused_t = lax.dot_general(
        w_ref[...], x_ref[...],
        dimension_numbers=(((1,), (1,)), ((), ())),
        preferred_element_type=jnp.float32) + b_ref[...]          # (2E, TM) f32

    logits = fused_t[:num_experts, :]                              # (E, TM)
    noise_logits = fused_t[num_experts:, :]                        # (E, TM)

    # noisy = logits + randn * softplus(noise_logits)
    noisy = logits + noise_ref[...].astype(jnp.float32) * jax.nn.softplus(noise_logits)

    e, tm = noisy.shape
    row_ids = lax.broadcasted_iota(jnp.int32, (e, tm), 0)
    neg_inf = jnp.float32(-jnp.inf)

    # Iterative top-k over the (small) expert/sublane axis: repeatedly take the
    # per-token max (first occurrence on ties, like torch.topk) and mask it out.
    work = noisy
    idx_rows = []
    top1 = None
    for k in range(top_k):
        m = jnp.max(work, axis=0, keepdims=True)                                # (1, TM)
        idx = jnp.min(jnp.where(work == m, row_ids, e), axis=0, keepdims=True)  # (1, TM)
        if k == 0:
            top1 = m
        idx_rows.append(idx)
        work = jnp.where(row_ids == idx, neg_inf, work)

    # Positions masked out during top-k are exactly the selected ones.
    selected = work == neg_inf
    # Sparse softmax, stabilized by the top-1 value (== max of the kept set).
    p = jnp.where(selected, jnp.exp(noisy - top1), 0.0)
    denom = jnp.sum(p, axis=0, keepdims=True)
    router_ref[...] = p / denom
    indices_ref[...] = jnp.concatenate(idx_rows, axis=0).astype(jnp.int32)


def noisy_topk_router(mh_output, w_route, b_route, w_noise, b_noise, noise,
                      top_k, *, tm=512, vmem_limit_bytes=None):
    """NoisyTopkRouter forward.

    mh_output: (..., n_embed); w_*: (num_experts, n_embed) (nn.Linear layout);
    b_*: (num_experts,); noise: (..., num_experts) ~ N(0, 1).
    Returns (router_output (..., num_experts) f32, indices (..., top_k) i32).

    tm: token tile (rounded to a multiple of 128). Pick larger (with a raised
    vmem_limit_bytes) on v5e/v6e's 128 MiB VMEM; keep it smaller on v7x (64 MiB).
    """
    *lead, d = mh_output.shape
    e = w_route.shape[0]
    assert 0 < top_k <= e, (top_k, e)

    x = mh_output.reshape(-1, d)
    n = x.shape[0]

    # Token tile: multiple of 128 (lane width of the transposed outputs).
    tm = max(128, (int(tm) // 128) * 128)
    tm = min(tm, pl.cdiv(n, 128) * 128)
    n_pad = pl.cdiv(n, tm) * tm
    if n_pad != n:
        x = jnp.pad(x, ((0, n_pad - n), (0, 0)))

    # Fused weights: single (2E, d) projection instead of two (E, d) ones.
    w_cat = jnp.concatenate([w_route, w_noise], axis=0).astype(x.dtype)      # (2E, d)
    b_cat = jnp.concatenate([b_route, b_noise]).reshape(2 * e, 1).astype(jnp.float32)

    # Noise pre-transposed to the lane-dense (E, N) layout (tiny array).
    noise_t = noise.reshape(-1, e).T
    if n_pad != n:
        noise_t = jnp.pad(noise_t, ((0, 0), (0, n_pad - n)))

    kernel = functools.partial(_noisy_topk_router_kernel, top_k=top_k, num_experts=e)
    grid = (n_pad // tm,)

    router_t, indices_t = pl.pallas_call(
        kernel,
        out_shape=(jax.ShapeDtypeStruct((e, n_pad), jnp.float32),
                   jax.ShapeDtypeStruct((top_k, n_pad), jnp.int32)),
        grid=grid,
        in_specs=[
            # x: the big streamed input (double-buffered by Pallas).
            # If profiling shows exposed DMA, add pipeline_mode=pl.Buffered(3).
            pl.BlockSpec((tm, d), lambda i: (i, 0)),
            pl.BlockSpec((2 * e, d), lambda i: (0, 0)),   # fused weights: resident
            pl.BlockSpec((2 * e, 1), lambda i: (0, 0)),   # fused bias: resident
            pl.BlockSpec((e, tm), lambda i: (0, i)),      # noise (lane-dense)
        ],
        out_specs=(pl.BlockSpec((e, tm), lambda i: (0, i)),
                   pl.BlockSpec((top_k, tm), lambda i: (0, i))),
        compiler_params=pltpu.CompilerParams(
            dimension_semantics=("parallel",),
            vmem_limit_bytes=vmem_limit_bytes),
    )(x, w_cat, b_cat, noise_t)

    router = router_t[:, :n].T.reshape(*lead, e)
    indices = indices_t[:, :n].T.reshape(*lead, top_k)
    return router, indices


if __name__ == "__main__":
    # Small, module-consistent shapes.
    batch, seq, n_embed, num_experts, top_k = 2, 8, 32, 8, 2

    key = jax.random.PRNGKey(0)
    k_x, k_w1, k_b1, k_w2, k_b2, k_noise = jax.random.split(key, 6)

    # nn.Linear-style deterministic init: U(-1/sqrt(in), 1/sqrt(in)).
    bound = 1.0 / (n_embed ** 0.5)
    w_route = jax.random.uniform(k_w1, (num_experts, n_embed), jnp.float32, -bound, bound)
    b_route = jax.random.uniform(k_b1, (num_experts,), jnp.float32, -bound, bound)
    w_noise = jax.random.uniform(k_w2, (num_experts, n_embed), jnp.float32, -bound, bound)
    b_noise = jax.random.uniform(k_b2, (num_experts,), jnp.float32, -bound, bound)

    mh_output = jax.random.normal(k_x, (batch, seq, n_embed), jnp.float32)
    # torch.randn_like(logits) equivalent, sampled once outside the kernel.
    noise = jax.random.normal(k_noise, (batch, seq, num_experts), jnp.float32)

    router_output, indices = noisy_topk_router(
        mh_output, w_route, b_route, w_noise, b_noise, noise, top_k)
    router_output = jax.block_until_ready(router_output)
    indices = jax.block_until_ready(indices)

    # Pure-JAX reference with the PyTorch module's semantics.
    def reference(x, w_r, b_r, w_n, b_n, z, k):
        logits = x @ w_r.T + b_r
        noise_logits = x @ w_n.T + b_n
        noisy = logits + z * jax.nn.softplus(noise_logits)
        _, top_idx = lax.top_k(noisy, k)
        mask = jnp.sum(jax.nn.one_hot(top_idx, noisy.shape[-1]), axis=-2) > 0
        sparse = jnp.where(mask, noisy, -jnp.inf)
        return jax.nn.softmax(sparse, axis=-1), top_idx

    ref_out, ref_idx = reference(mh_output, w_route, b_route, w_noise, b_noise,
                                 noise, top_k)

    # Sanity + correctness checks.
    assert router_output.shape == (batch, seq, num_experts)
    assert indices.shape == (batch, seq, top_k)
    assert jnp.allclose(jnp.sum(router_output, axis=-1), 1.0, atol=1e-5)
    assert jnp.all(jnp.sum(router_output > 0.0, axis=-1) == top_k)
    assert jnp.all((indices >= 0) & (indices < num_experts))
    assert jnp.allclose(router_output, ref_out, atol=1e-5), \
        float(jnp.max(jnp.abs(router_output - ref_out)))
    assert jnp.all(indices == ref_idx)

    print("KERNEL_OK")
</pallas_src>

<mosaic_0001>
module attributes {stable_mosaic.version = 11 : i64} {
  func.func @_noisy_topk_router_kernel(%arg0: i32, %arg1: memref<128x32xf32, #tpu.memory_space<vmem>>, %arg2: memref<16x32xf32, #tpu.memory_space<vmem>>, %arg3: memref<16x1xf32, #tpu.memory_space<vmem>>, %arg4: memref<8x128xf32, #tpu.memory_space<vmem>>, %arg5: memref<8x128xf32, #tpu.memory_space<vmem>>, %arg6: memref<2x128xi32, #tpu.memory_space<vmem>>) attributes {dimension_semantics = [#tpu.dimension_semantics<parallel>], iteration_bounds = array<i64: 1>, scalar_prefetch = 0 : i64, scratch_operands = 0 : i64, tpu.core_type = #tpu.core_type<tc>, window_params = [{transform_indices = @transform_0, window_bounds = array<i64: 128, 32>}, {pipeline_mode = #tpu.pipeline_mode<synchronous>, transform_indices = @transform_1, window_bounds = array<i64: 16, 32>}, {pipeline_mode = #tpu.pipeline_mode<synchronous>, transform_indices = @transform_2, window_bounds = array<i64: 16, 1>}, {transform_indices = @transform_3, window_bounds = array<i64: 8, 128>}, {transform_indices = @transform_4, window_bounds = array<i64: 8, 128>}, {transform_indices = @transform_5, window_bounds = array<i64: 2, 128>}]} {
    %c0 = arith.constant 0 : index
    %c0_0 = arith.constant 0 : index
    %0 = vector.load %arg2[%c0, %c0_0] : memref<16x32xf32, #tpu.memory_space<vmem>>, vector<16x32xf32>
    %c0_1 = arith.constant 0 : index
    %c0_2 = arith.constant 0 : index
    %1 = vector.load %arg1[%c0_1, %c0_2] : memref<128x32xf32, #tpu.memory_space<vmem>>, vector<128x32xf32>
    %cst = arith.constant dense<0.000000e+00> : vector<16x128xf32>
    %2 = tpu.matmul %0, %1, %cst {dimension_numbers = #tpu.dot_dimension_numbers<[1], [1], [0], [0], [0, 0, 1, 0], [], []>} : vector<16x32xf32>, vector<128x32xf32>, vector<16x128xf32> -> vector<16x128xf32>
    %c0_3 = arith.constant 0 : index
    %c0_4 = arith.constant 0 : index
    %3 = vector.load %arg3[%c0_3, %c0_4] : memref<16x1xf32, #tpu.memory_space<vmem>>, vector<16x1xf32>
    %4 = vector.broadcast %3 : vector<16x1xf32> to vector<16x128xf32>
    %5 = arith.addf %2, %4 : vector<16x128xf32>
    %6 = vector.extract_strided_slice %5 {offsets = [0, 0], sizes = [8, 128], strides = [1, 1]} : vector<16x128xf32> to vector<8x128xf32>
    %7 = vector.extract_strided_slice %5 {offsets = [8, 0], sizes = [8, 128], strides = [1, 1]} : vector<16x128xf32> to vector<8x128xf32>
    %c0_5 = arith.constant 0 : index
    %c0_6 = arith.constant 0 : index
    %8 = vector.load %arg4[%c0_5, %c0_6] : memref<8x128xf32, #tpu.memory_space<vmem>>, vector<8x128xf32>
    %cst_7 = arith.constant 0.000000e+00 : f32
    %9 = vector.broadcast %cst_7 : f32 to vector<8x128xf32>
    %10 = arith.maximumf %7, %9 : vector<8x128xf32>
    %11 = vector.broadcast %cst_7 : f32 to vector<8x128xf32>
    %12 = arith.subf %7, %11 : vector<8x128xf32>
    %13 = arith.cmpf one, %12, %12 : vector<8x128xf32>
    %14 = vector.broadcast %cst_7 : f32 to vector<8x128xf32>
    %15 = arith.addf %7, %14 : vector<8x128xf32>
    %16 = math.absf %12 : vector<8x128xf32>
    %cst_8 = arith.constant 0.000000e+00 : f32
    %17 = vector.broadcast %cst_8 : f32 to vector<8x128xf32>
    %18 = arith.subf %17, %16 : vector<8x128xf32>
    %19 = math.exp %18 : vector<8x128xf32>
    %20 = math.log1p %19 : vector<8x128xf32>
    %21 = arith.addf %10, %20 : vector<8x128xf32>
    %22 = arith.select %13, %15, %21 : vector<8x128xi1>, vector<8x128xf32>
    %23 = arith.mulf %8, %22 : vector<8x128xf32>
    %24 = arith.addf %6, %23 : vector<8x128xf32>
    %25 = tpu.iota {dimensions = array<i32: 0>} : vector<8x128xi32>
    %cst_9 = arith.constant dense<0xFF800000> : vector<128xf32>
    %26 = vector.multi_reduction <maximumf>, %24, %cst_9 [0] : vector<8x128xf32> to vector<128xf32>
    %27 = vector.shape_cast %26 : vector<128xf32> to vector<1x128xf32>
    %28 = vector.broadcast %27 : vector<1x128xf32> to vector<8x128xf32>
    %29 = arith.cmpf oeq, %24, %28 : vector<8x128xf32>
    %c8_i32 = arith.constant 8 : i32
    %30 = vector.broadcast %c8_i32 : i32 to vector<8x128xi32>
    %31 = arith.select %29, %25, %30 : vector<8x128xi1>, vector<8x128xi32>
    %cst_10 = arith.constant dense<2147483647> : vector<128xi32>
    %32 = vector.multi_reduction <minsi>, %31, %cst_10 [0] : vector<8x128xi32> to vector<128xi32>
    %33 = vector.shape_cast %32 : vector<128xi32> to vector<1x128xi32>
    %34 = vector.broadcast %33 : vector<1x128xi32> to vector<8x128xi32>
    %35 = arith.cmpi eq, %25, %34 : vector<8x128xi32>
    %cst_11 = arith.constant 0xFF800000 : f32
    %36 = vector.broadcast %cst_11 : f32 to vector<8x128xf32>
    %37 = arith.select %35, %36, %24 : vector<8x128xi1>, vector<8x128xf32>
    %cst_12 = arith.constant dense<0xFF800000> : vector<128xf32>
    %38 = vector.multi_reduction <maximumf>, %37, %cst_12 [0] : vector<8x128xf32> to vector<128xf32>
    %39 = vector.shape_cast %38 : vector<128xf32> to vector<1x128xf32>
    %40 = vector.broadcast %39 : vector<1x128xf32> to vector<8x128xf32>
    %41 = arith.cmpf oeq, %37, %40 : vector<8x128xf32>
    %c8_i32_13 = arith.constant 8 : i32
    %42 = vector.broadcast %c8_i32_13 : i32 to vector<8x128xi32>
    %43 = arith.select %41, %25, %42 : vector<8x128xi1>, vector<8x128xi32>
    %cst_14 = arith.constant dense<2147483647> : vector<128xi32>
    %44 = vector.multi_reduction <minsi>, %43, %cst_14 [0] : vector<8x128xi32> to vector<128xi32>
    %45 = vector.shape_cast %44 : vector<128xi32> to vector<1x128xi32>
    %46 = vector.broadcast %45 : vector<1x128xi32> to vector<8x128xi32>
    %47 = arith.cmpi eq, %25, %46 : vector<8x128xi32>
    %cst_15 = arith.constant 0xFF800000 : f32
    %48 = vector.broadcast %cst_15 : f32 to vector<8x128xf32>
    %49 = arith.select %47, %48, %37 : vector<8x128xi1>, vector<8x128xf32>
    %cst_16 = arith.constant 0xFF800000 : f32
    %50 = vector.broadcast %cst_16 : f32 to vector<8x128xf32>
    %51 = arith.cmpf oeq, %49, %50 : vector<8x128xf32>
    %52 = vector.broadcast %27 : vector<1x128xf32> to vector<8x128xf32>
    %53 = arith.subf %24, %52 : vector<8x128xf32>
    %54 = math.exp %53 : vector<8x128xf32>
    %cst_17 = arith.constant 0.000000e+00 : f32
    %55 = vector.broadcast %cst_17 : f32 to vector<8x128xf32>
    %56 = arith.select %51, %54, %55 : vector<8x128xi1>, vector<8x128xf32>
    %cst_18 = arith.constant dense<0.000000e+00> : vector<128xf32>
    %57 = vector.multi_reduction <add>, %56, %cst_18 [0] : vector<8x128xf32> to vector<128xf32>
    %58 = vector.shape_cast %57 : vector<128xf32> to vector<1x128xf32>
    %59 = vector.broadcast %58 : vector<1x128xf32> to vector<8x128xf32>
    %60 = arith.divf %56, %59 : vector<8x128xf32>
    %c0_19 = arith.constant 0 : index
    %c0_20 = arith.constant 0 : index
    %61 = vector.load %arg5[%c0_19, %c0_20] : memref<8x128xf32, #tpu.memory_space<vmem>>, vector<8x128xf32>
    tpu.vector_store %arg5[%c0_19, %c0_20], %60 {strides = array<i32>} : memref<8x128xf32, #tpu.memory_space<vmem>>, vector<8x128xf32>,
    %62 = tpu.concatenate %33, %45 in 0 : vector<1x128xi32>, vector<1x128xi32> -> vector<2x128xi32>
    %c0_21 = arith.constant 0 : index
    %c0_22 = arith.constant 0 : index
    %63 = vector.load %arg6[%c0_21, %c0_22] : memref<2x128xi32, #tpu.memory_space<vmem>>, vector<2x128xi32>
    tpu.vector_store %arg6[%c0_21, %c0_22], %62 {strides = array<i32>} : memref<2x128xi32, #tpu.memory_space<vmem>>, vector<2x128xi32>,
    return
  }
  func.func @transform_0(%arg0: i32) -> (i32, i32) {
    %c0_i32 = arith.constant 0 : i32
    %c0_i32_0 = arith.constant 0 : i32
    return %arg0, %c0_i32 : i32, i32
  }
  func.func @transform_1(%arg0: i32) -> (i32, i32) {
    %c0_i32 = arith.constant 0 : i32
    %c0_i32_0 = arith.constant 0 : i32
    %c0_i32_1 = arith.constant 0 : i32
    return %c0_i32, %c0_i32_0 : i32, i32
  }
  func.func @transform_2(%arg0: i32) -> (i32, i32) {
    %c0_i32 = arith.constant 0 : i32
    %c0_i32_0 = arith.constant 0 : i32
    %c0_i32_1 = arith.constant 0 : i32
    return %c0_i32, %c0_i32_0 : i32, i32
  }
  func.func @transform_3(%arg0: i32) -> (i32, i32) {
    %c0_i32 = arith.constant 0 : i32
    %c0_i32_0 = arith.constant 0 : i32
    return %c0_i32, %arg0 : i32, i32
  }
  func.func @transform_4(%arg0: i32) -> (i32, i32) {
    %c0_i32 = arith.constant 0 : i32
    %c0_i32_0 = arith.constant 0 : i32
    return %c0_i32, %arg0 : i32, i32
  }
  func.func @transform_5(%arg0: i32) -> (i32, i32) {
    %c0_i32 = arith.constant 0 : i32
    %c0_i32_0 = arith.constant 0 : i32
    return %c0_i32, %arg0 : i32, i32
  }
}

</mosaic_0001>

<llo_original>
// kernel: tpu_custom_call.1
$region0: #{tpu_custom_call.1}
  #allocation0 [shape = 'u32[]', space=smem, size = 0x4, offset = 0x4, fixed_abs, tag = 'smem constant byte address 0x4 - core index']
  #allocation1 [shape = 'u32[72,128]{1,0:T(1,128)}', space=vmem, size = 0x9000, scoped, tag = 'internal scratch']
  %s0 = inlined_call_operand.vmem [shape: f32[128,32], index: 0, kind: input, shape index: {}]
  %s1 = inlined_call_operand.vmem [shape: f32[16,32], index: 1, kind: input, shape index: {}]
  %s2 = inlined_call_operand.vmem [shape: f32[16,1], index: 2, kind: input, shape index: {}]
  %s3 = inlined_call_operand.vmem [shape: f32[8,128], index: 3, kind: input, shape index: {}]
  %s4 = inlined_call_operand.hbm [shape: f32[8,128], index: 4, kind: output, shape index: {0}]
  %s5 = inlined_call_operand.hbm [shape: s32[2,128], index: 5, kind: output, shape index: {1}]
  %6 = xla_tuple %s4, %s5
  %s7 = sld [smem:[#allocation0]]
  $region34: #{tpu_custom_call.1} parent=0
    _
  %s9 = ssub.s32 1, %s7
  %s10 = scalar_select 0, %s9, %s7
  $region1: #{tpu_custom_call.1} parent=0
    #allocation2 [shape = 'u8[4096]{0}', space=vmem, size = 0x1000, scoped, tag = 'output window, operand 0, single buffered']
    #allocation3 [shape = 's32[1]{0}', space=sflag, size = 0x4, scoped, tag = 'scoped memory for tpu_custom_call.1']
    #allocation4 [shape = 'u8[1024]{0}', space=vmem, size = 0x400, scoped, tag = 'output window, operand 1, single buffered']
    #allocation5 [shape = 's32[1]{0}', space=sflag, size = 0x4, scoped, tag = 'scoped memory for tpu_custom_call.1']
    %11 = vsyncpa [#allocation3], 0
    %12 = vsyncpa [#allocation5], 0
    // Predicated region
    $region2: #{tpu_custom_call.1} parent=1 // pred_check
      _
    $region3: #{tpu_custom_call.1} parent=1 // pred_check_branch
      %14 = sbr.rel (0) target = $region5
    $region4: #{tpu_custom_call.1} parent=1 // pred_region
      _
    $region5: #{tpu_custom_call.1} parent=1 // pred_fallthru
      _
    // Predicated region
    $region6: #{tpu_custom_call.1} parent=1 // pred_check
      _
    $region7: #{tpu_custom_call.1} parent=1 // pred_check_branch
      %16 = sbr.rel (0) target = $region9
    $region8: #{tpu_custom_call.1} parent=1 // pred_region
      _
    $region9: #{tpu_custom_call.1} parent=1 // pred_fallthru
      _
    // Predicated region
    $region10: #{tpu_custom_call.1} parent=1 // pred_check
      _
    $region11: #{tpu_custom_call.1} parent=1 // pred_check_branch
      %18 = sbr.rel (0) target = $region13
    $region12: #{tpu_custom_call.1} parent=1 // pred_region
      _
    $region13: #{tpu_custom_call.1} parent=1 // pred_fallthru
      _
    // Predicated region
    $region14: #{tpu_custom_call.1} parent=1 // pred_check
      _
    $region15: #{tpu_custom_call.1} parent=1 // pred_check_branch
      %20 = sbr.rel (0) target = $region17
    $region16: #{tpu_custom_call.1} parent=1 // pred_region
      _
    $region17: #{tpu_custom_call.1} parent=1 // pred_fallthru
      _
    %v21 = vld [vmem:[%s1] sm:$0xff]
    %v22 = vld [vmem:[%s1 + $0x8] sm:$0xff]
    %v23 = vld [vmem:[%s0] sm:$0xff]
    %v24 = vld [vmem:[%s0 + $0x8] sm:$0xff]
    %v25 = vld [vmem:[%s0 + $0x10] sm:$0xff]
    %v26 = vld [vmem:[%s0 + $0x18] sm:$0xff]
    %v27 = vld [vmem:[%s0 + $0x20] sm:$0xff]
    %v28 = vld [vmem:[%s0 + $0x28] sm:$0xff]
    %v29 = vld [vmem:[%s0 + $0x30] sm:$0xff]
    %v30 = vld [vmem:[%s0 + $0x38] sm:$0xff]
    %v31 = vld [vmem:[%s0 + $0x40] sm:$0xff]
    %v32 = vld [vmem:[%s0 + $0x48] sm:$0xff]
    %v33 = vld [vmem:[%s0 + $0x50] sm:$0xff]
    %v34 = vld [vmem:[%s0 + $0x58] sm:$0xff]
    %v35 = vld [vmem:[%s0 + $0x60] sm:$0xff]
    %v36 = vld [vmem:[%s0 + $0x68] sm:$0xff]
    %v37 = vld [vmem:[%s0 + $0x70] sm:$0xff]
    %v38 = vld [vmem:[%s0 + $0x78] sm:$0xff]
    %v39 = vld [vmem:[%s2] sm:$0xff]
    %v40 = vld [vmem:[%s2 + $0x8] sm:$0xff]
    %42 = vset.pattern.permute.xlu0 0
    %43 = vperm.xlu0 %42, %v39
    %v44 = vpop.permute.xlu0 %43
    %47 = vset.pattern.permute.xlu0 0
    %48 = vperm.xlu0 %47, %v40
    %v49 = vpop.permute.xlu0 %48
    %vm51 = vcmask 261120
    %v53 = vsel %vm51, %v21, 0
    %v56 = vsel %vm51, %v22, 0
    %v59 = vsel %vm51, %v23, 0
    %v62 = vsel %vm51, %v24, 0
    %v65 = vsel %vm51, %v25, 0
    %v68 = vsel %vm51, %v26, 0
    %v71 = vsel %vm51, %v27, 0
    %v74 = vsel %vm51, %v28, 0
    %v77 = vsel %vm51, %v29, 0
    %v80 = vsel %vm51, %v30, 0
    %v83 = vsel %vm51, %v31, 0
    %v86 = vsel %vm51, %v32, 0
    %v89 = vsel %vm51, %v33, 0
    %v92 = vsel %vm51, %v34, 0
    %v95 = vsel %vm51, %v35, 0
    %v98 = vsel %vm51, %v36, 0
    %v101 = vsel %vm51, %v37, 0
    %v104 = vsel %vm51, %v38, 0
    %106 = vmatpush.xpose.msra.mxu0 %v104
    %107 = vmatpush.xpose.msra.mxu0 %v101
    %108 = vmatpush.xpose.msra.mxu0 %v98
    %109 = vmatpush.xpose.msra.mxu0 %v95
    %110 = vmatpush.xpose.msra.mxu0 %v92
    %111 = vmatpush.xpose.msra.mxu0 %v89
    %112 = vmatpush.xpose.msra.mxu0 %v86
    %113 = vmatpush.xpose.msra.mxu0 %v83
    %114 = vmatpush.xpose.msra.mxu0 %v80
    %115 = vmatpush.xpose.msra.mxu0 %v77
    %116 = vmatpush.xpose.msra.mxu0 %v74
    %117 = vmatpush.xpose.msra.mxu0 %v71
    %118 = vmatpush.xpose.msra.mxu0 %v68
    %119 = vmatpush.xpose.msra.mxu0 %v65
    %120 = vmatpush.xpose.msra.mxu0 %v62
    %121 = vmatpush.xpose.msra.mxu0 %v59
    %122 = vmatmul.f32.gmra.mxu0 %v53
    %v123 = vpop.f32.mrf.mxu0
    %v124 = vadd.f32 %v44, %v123
    %125 = vmatmul.f32.gmra.mxu0 %v56
    %v126 = vpop.f32.mrf.mxu0
    %v127 = vadd.f32 %v49, %v126
    %128 = vdwg.mxu0
    %v129 = vld [vmem:[%s3] sm:$0xff]
    %v130 = vmax.f32 %v127, 0.0
    %vm131 = vcmp.ne.f32.partialorder %v127, %v127
    %v132 = vadd.f32 %v127, 0.0
    %v133 = vand.u32 2147483647, %v127
    %v134 = vsub.f32 0.0, %v133
    %v135 = vmul.f32 %v134, 1.442695
    %v136 = vpow.pop %v135
    %v137 = vadd.f32 %v136, 1.0
    %v138 = vlog2.pop %v137
    %v139 = vmul.f32 %v138, 0.6931472
    %v140 = vmul.f32 -0.5, %v136
    %v141 = vadd.f32 %v140, 1.0
    %v142 = vmul.f32 %v141, %v136
    %v143 = vand.u32 2147483647, %v136
    %vm144 = vcmp.lt.f32.partialorder %v143, 0.0004427343
    %v145 = vsel %vm144, %v142, %v139
    %v146 = vadd.f32 %v130, %v145
    %v147 = vsel %vm131, %v132, %v146
    %v148 = vmul.f32 %v129, %v147
    %v149 = vadd.f32 %v124, %v148
    %v150 = vlaneseq
    %v151 = vshrl.u32 %v150, 7
    %v152 = vrot.slane %v149, 4
    %v153 = vmax.f32 %v149, %v152
    %v154 = vrot.slane %v153, 2
    %v155 = vmax.f32 %v153, %v154
    %v156 = vrot.slane %v155, 1
    %v157 = vmax.f32 %v155, %v156
    %vm158 = vcmp.eq.f32.partialorder %v149, %v157
    %v159 = vsel %vm158, %v151, 8
    %v160 = vrot.slane %v159, 4
    %vm161 = vcmp.lt.s32.totalorder %v159, %v160
    %v162 = vsel %vm161, %v159, %v160
    %v163 = vrot.slane %v162, 2
    %vm164 = vcmp.lt.s32.totalorder %v162, %v163
    %v165 = vsel %vm164, %v162, %v163
    %v166 = vrot.slane %v165, 1
    %vm167 = vcmp.lt.s32.totalorder %v165, %v166
    %v168 = vsel %vm167, %v165, %v166
    %vm169 = vcmp.eq.s32.totalorder %v151, %v168
    %v170 = vsel %vm169, -inf, %v149
    %v171 = vrot.slane %v170, 4
    %v172 = vmax.f32 %v170, %v171
    %v173 = vrot.slane %v172, 2
    %v174 = vmax.f32 %v172, %v173
    %v175 = vrot.slane %v174, 1
    %v176 = vmax.f32 %v174, %v175
    %vm177 = vcmp.eq.f32.partialorder %v170, %v176
    %v178 = vsel %vm177, %v151, 8
    %v179 = vrot.slane %v178, 4
    %vm180 = vcmp.lt.s32.totalorder %v178, %v179
    %v181 = vsel %vm180, %v178, %v179
    %v182 = vrot.slane %v181, 2
    %vm183 = vcmp.lt.s32.totalorder %v181, %v182
    %v184 = vsel %vm183, %v181, %v182
    %v185 = vrot.slane %v184, 1
    %vm186 = vcmp.lt.s32.totalorder %v184, %v185
    %v187 = vsel %vm186, %v184, %v185
    %vm188 = vcmp.eq.s32.totalorder %v151, %v187
    %v189 = vsel %vm188, -inf, %v170
    %vm190 = vcmp.eq.f32.partialorder %v189, -inf
    %v191 = vsub.f32 %v149, %v157
    %v192 = vmul.f32 %v191, 1.442695
    %v193 = vpow.pop %v192
    %v194 = vsel %vm190, %v193, 0.0
    %v195 = vrot.slane %v194, 4
    %v196 = vadd.f32 %v194, %v195
    %v197 = vrot.slane %v196, 2
    %v198 = vadd.f32 %v196, %v197
    %v199 = vrot.slane %v198, 1
    %v200 = vadd.f32 %v198, %v199
    %v201 = vrcp.pop %v200
    %v202 = vmul.f32 %v200, %v201
    %v203 = vsub.f32 1.0, %v202
    %v204 = vmul.f32 %v201, %v203
    %v205 = vadd.f32 %v201, %v204
    %vm206 = vweird.f32 %v200
    %vm207 = vweird.f32 %v201
    %vm208 = vmor %vm206, %vm207
    %v209 = vsel %vm208, %v201, %v205
    %v210 = vand.u32 2147483647, %v200
    %vm211 = vcmp.eq.f32.partialorder %v210, 8.507059e+37
    %v212 = vand.u32 %v200, 2147483648
    %v213 = vor.u32 1.1754944e-38, %v212
    %v214 = vsel %vm211, %v213, %v209
    %v215 = vmul.f32 %v194, %v214
    %216 = vst [vmem:[#allocation2] sm:$0xff] %v215
    %vm217 = vcmask 1040384
    %v218 = vsel %vm217, %v168, %v187
    %219 = vst [vmem:[#allocation4] sm:$0x3] %v218
    // Predicated region
    $region18: #{tpu_custom_call.1} parent=1 // pred_check
      _
    $region19: #{tpu_custom_call.1} parent=1 // pred_check_branch
      %221 = sbr.rel (0) target = $region21
    $region20: #{tpu_custom_call.1} parent=1 // pred_region
      %223 = vsyncadd [#allocation3], 0
      %s225 = sshll.u32 [#allocation2], 4
      %s226 = int_to_ptr.vmem [resolvable:$true] %s225
      %s227 = sshll.u32 %s4, 4
      %s228 = int_to_ptr.hbm [resolvable:$true] %s227
      %230 = dma.vmem_to_hbm [thread:$0]  %s226, 128, %s228, [#allocation3]
    $region21: #{tpu_custom_call.1} parent=1 // pred_fallthru
      _
    // Predicated region
    $region22: #{tpu_custom_call.1} parent=1 // pred_check
      _
    $region23: #{tpu_custom_call.1} parent=1 // pred_check_branch
      %232 = sbr.rel (0) target = $region25
    $region24: #{tpu_custom_call.1} parent=1 // pred_region
      %234 = vsyncadd [#allocation5], 0
      %s236 = sshll.u32 [#allocation4], 4
      %s237 = int_to_ptr.vmem [resolvable:$true] %s236
      %s238 = sshll.u32 %s5, 4
      %s239 = int_to_ptr.hbm [resolvable:$true] %s238
      %241 = dma.vmem_to_hbm [thread:$0]  %s237, 32, %s239, [#allocation5]
    $region25: #{tpu_custom_call.1} parent=1 // pred_fallthru
      _
    // Predicated region
    $region26: #{tpu_custom_call.1} parent=1 // pred_check
      _
    $region27: #{tpu_custom_call.1} parent=1 // pred_check_branch
      %243 = sbr.rel (0) target = $region29
    $region28: #{tpu_custom_call.1} parent=1 // pred_region
      %245 = dma.done [#allocation3], 128
    $region29: #{tpu_custom_call.1} parent=1 // pred_fallthru
      _
    // Predicated region
    $region30: #{tpu_custom_call.1} parent=1 // pred_check
      _
    $region31: #{tpu_custom_call.1} parent=1 // pred_check_branch
      %247 = sbr.rel (0) target = $region33
    $region32: #{tpu_custom_call.1} parent=1 // pred_region
      %249 = dma.done [#allocation5], 32
    $region33: #{tpu_custom_call.1} parent=1 // pred_fallthru
      _
    %250 = vsyncpa [#allocation3], 1
    %251 = vsyncpa [#allocation5], 1

</llo_original>
